<compile_context>
chip_gen: v7x
topology: tpu7x:2x2x1
jax: 0.10.0
libtpu: 0.0.40
codegen_flags: <defaults>
</compile_context>

<pallas_src>
import functools

import jax
import jax.numpy as jnp
from jax.experimental import pallas as pl
from jax.experimental.pallas import tpu as pltpu


def _residual_block_kernel(H, W, N, C, x_ref, w1_ref, b1_ref, w2_ref, b2_ref,
                           out_ref, taps_ref):
    """Whole batch in one step, NCHW flattened+packed to (N*C, H*W).

    x_ref    : (N*C, H*W)        activations (batch*channels on sublanes,
                                  flattened spatial on lanes)
    w*_ref   : (N*C, 9*N*C)      block-diagonal (over batch) stacked-tap conv
                                  weights with BN scale folded in
    b*_ref   : (N*C, 1)          folded BatchNorm bias (tiled over batch)
    out_ref  : (N*C, H*W)
    taps_ref : (9*N*C, H*W) VMEM scratch holding the 9 rolled+masked taps
    """
    HW = H * W
    NC = N * C

    x = x_ref[...]  # (NC, HW) f32

    # --- spatial row/col of every lane position (built in-kernel, no inputs) ---
    pos = jax.lax.broadcasted_iota(jnp.int32, (NC, HW), 1)
    if (W & (W - 1)) == 0:  # power of two -> shift / and (cheap VPU ops)
        log2w = W.bit_length() - 1
        row = pos >> log2w
        col = pos & (W - 1)
    else:
        row = pos // W
        col = pos % W

    # --- 3x3 tap offsets and their boundary masks, built ONCE, reused by both convs ---
    offsets = [(ky - 1, kx - 1) for ky in range(3) for kx in range(3)]
    masks = []
    for dy, dx in offsets:
        conds = []
        if dy < 0:
            conds.append(row >= -dy)
        if dy > 0:
            conds.append(row < H - dy)
        if dx < 0:
            conds.append(col >= -dx)
        if dx > 0:
            conds.append(col < W - dx)
        if conds:
            m = conds[0]
            for c2 in conds[1:]:
                m = m & c2
            masks.append(m)
        else:
            masks.append(None)  # center tap

    def build_taps(inp):
        """Write the 9 rolled+masked copies of inp into taps_ref (sublane-stacked)."""
        for t, (dy, dx) in enumerate(offsets):
            shift = (-(dy * W + dx)) % HW
            # tap[s] = inp[s + dy*W + dx]  (lane rotate -> XLU, per sublane row)
            tap = inp if shift == 0 else pltpu.roll(inp, shift, axis=1)
            if masks[t] is not None:
                tap = jnp.where(masks[t], tap, 0.0)
            taps_ref[pl.ds(t * NC, NC), :] = tap
        return taps_ref[...]  # (9*NC, HW)

    # conv1 (+ folded BN) + ReLU   -- single MXU push: (NC, 9*NC) @ (9*NC, HW)
    t1 = build_taps(x)
    h1 = jnp.maximum(
        jnp.dot(w1_ref[...], t1, preferred_element_type=jnp.float32) + b1_ref[...],
        0.0)

    # conv2 (+ folded BN)          -- single MXU push
    t2 = build_taps(h1)
    h2 = jnp.dot(w2_ref[...], t2, preferred_element_type=jnp.float32) + b2_ref[...]

    # identity shortcut (self.right is None) + final ReLU
    out_ref[...] = jnp.maximum(h2 + x, 0.0)


def _fold_bn(gamma, beta, mean, var, eps=1e-5):
    scale = gamma / jnp.sqrt(var + eps)
    bias = beta - mean * scale
    return scale, bias


def residual_block(x, w1, g1, be1, m1, v1, w2, g2, be2, m2, v2, eps=1e-5):
    """x: (N, Cin, H, W) f32 (PyTorch NCHW). w*: (Cout, Cin, 3, 3) (OIHW), bias=False.
    BatchNorm in inference mode (running stats folded). Returns (N, Cout, H, W)."""
    # TODO(synk): training-mode BatchNorm (per-batch statistics + running-stat
    # update) is not implemented; inference running stats are folded instead.
    N, Cin, H, W = x.shape
    Cout = w1.shape[0]
    assert Cin == Cout, "identity shortcut requires inchannel == outchannel"
    HW = H * W
    NC = N * Cin

    s1, b1 = _fold_bn(g1, be1, m1, v1, eps)
    s2, b2 = _fold_bn(g2, be2, m2, v2, eps)

    def flatten_weight(w, s):
        # OIHW -> fold BN scale into output channels -> (tap, Cout, Cin) ->
        # block-diagonal over the batch: (N*Cout, 9*N*Cin).
        wf = jnp.transpose(w * s[:, None, None, None], (2, 3, 0, 1))  # (3,3,Co,Ci)
        wf = wf.reshape(9, Cout, Cin)                                  # tap-major
        eye = jnp.eye(N, dtype=wf.dtype)
        wbd = jnp.einsum('nm,tok->notmk', eye, wf)   # (N, Cout, 9, N, Cin)
        return wbd.reshape(N * Cout, 9 * N * Cin)

    w1f = flatten_weight(w1, s1)
    w2f = flatten_weight(w2, s2)
    b1f = jnp.tile(b1, N)[:, None]   # (N*Cout, 1)
    b2f = jnp.tile(b2, N)[:, None]

    # Free contiguous reshape NCHW -> (N*C, H*W): full 8-sublane, lane-dense tiles.
    xf = x.reshape(NC, HW)

    kern = functools.partial(_residual_block_kernel, H, W, N, Cin)
    out = pl.pallas_call(
        kern,
        out_shape=jax.ShapeDtypeStruct((NC, HW), jnp.float32),
        grid_spec=pltpu.PrefetchScalarGridSpec(
            num_scalar_prefetch=0,
            grid=(1,),   # whole batch in one step: no per-step DMA/loop overhead
            in_specs=[
                pl.BlockSpec((NC, HW), lambda i: (0, 0)),
                pl.BlockSpec((N * Cout, 9 * N * Cin), lambda i: (0, 0)),
                pl.BlockSpec((N * Cout, 1), lambda i: (0, 0)),
                pl.BlockSpec((N * Cout, 9 * N * Cout), lambda i: (0, 0)),
                pl.BlockSpec((N * Cout, 1), lambda i: (0, 0)),
            ],
            out_specs=pl.BlockSpec((NC, HW), lambda i: (0, 0)),
            scratch_shapes=[pltpu.VMEM((9 * NC, HW), jnp.float32)],
        ),
        compiler_params=pltpu.CompilerParams(
            dimension_semantics=("arbitrary",)),
    )(xf, w1f, b1f, w2f, b2f)
    return out.reshape(N, Cout, H, W)


def _ref_forward(x, w1, g1, be1, m1, v1, w2, g2, be2, m2, v2, eps=1e-5):
    """Pure-JAX NCHW reference (correctness check only)."""
    s1, b1 = _fold_bn(g1, be1, m1, v1, eps)
    s2, b2 = _fold_bn(g2, be2, m2, v2, eps)
    conv = lambda z, w: jax.lax.conv_general_dilated(
        z, w, window_strides=(1, 1), padding=((1, 1), (1, 1)),
        dimension_numbers=("NCHW", "OIHW", "NCHW"))
    h = jnp.maximum(conv(x, w1) * s1[None, :, None, None]
                    + b1[None, :, None, None], 0.0)
    h = conv(h, w2) * s2[None, :, None, None] + b2[None, :, None, None]
    return jnp.maximum(h + x, 0.0)


if __name__ == "__main__":
    key = jax.random.PRNGKey(0)
    k = jax.random.split(key, 11)

    N, C, H, W = 2, 4, 16, 16          # inchannel == outchannel (identity shortcut)

    x = jax.random.normal(k[0], (N, C, H, W), jnp.float32)       # NCHW like PyTorch

    # Conv weights in PyTorch OIHW layout, bias=False.
    w1 = jax.random.normal(k[1], (C, C, 3, 3), jnp.float32) * 0.1
    w2 = jax.random.normal(k[2], (C, C, 3, 3), jnp.float32) * 0.1

    # BatchNorm parameters (inference mode: running stats folded into scale/bias).
    g1 = 1.0 + 0.1 * jax.random.normal(k[3], (C,), jnp.float32)
    be1 = 0.1 * jax.random.normal(k[4], (C,), jnp.float32)
    m1 = 0.1 * jax.random.normal(k[5], (C,), jnp.float32)
    v1 = jnp.abs(jax.random.normal(k[6], (C,), jnp.float32)) + 0.5
    g2 = 1.0 + 0.1 * jax.random.normal(k[7], (C,), jnp.float32)
    be2 = 0.1 * jax.random.normal(k[8], (C,), jnp.float32)
    m2 = 0.1 * jax.random.normal(k[9], (C,), jnp.float32)
    v2 = jnp.abs(jax.random.normal(k[10], (C,), jnp.float32)) + 0.7

    out = residual_block(x, w1, g1, be1, m1, v1, w2, g2, be2, m2, v2)
    out = jax.block_until_ready(out)

    ref = _ref_forward(x, w1, g1, be1, m1, v1, w2, g2, be2, m2, v2)
    assert out.shape == (N, C, H, W)
    max_err = float(jnp.max(jnp.abs(out - ref)))
    assert max_err < 2e-3, f"mismatch vs reference (max |diff| = {max_err})"

    print("KERNEL_OK")
</pallas_src>

<mosaic_0001>
module attributes {stable_mosaic.version = 11 : i64} {
  func.func @_residual_block_kernel(%arg0: i32, %arg1: memref<8x256xf32, #tpu.memory_space<vmem>>, %arg2: memref<8x72xf32, #tpu.memory_space<vmem>>, %arg3: memref<8x1xf32, #tpu.memory_space<vmem>>, %arg4: memref<8x72xf32, #tpu.memory_space<vmem>>, %arg5: memref<8x1xf32, #tpu.memory_space<vmem>>, %arg6: memref<8x256xf32, #tpu.memory_space<vmem>>, %arg7: memref<72x256xf32, #tpu.memory_space<vmem>>) attributes {dimension_semantics = [#tpu.dimension_semantics<arbitrary>], iteration_bounds = array<i64: 1>, scalar_prefetch = 0 : i64, scratch_operands = 1 : i64, tpu.core_type = #tpu.core_type<tc>, window_params = [{pipeline_mode = #tpu.pipeline_mode<synchronous>, transform_indices = @transform_0, window_bounds = array<i64: 8, 256>}, {pipeline_mode = #tpu.pipeline_mode<synchronous>, transform_indices = @transform_1, window_bounds = array<i64: 8, 72>}, {pipeline_mode = #tpu.pipeline_mode<synchronous>, transform_indices = @transform_2, window_bounds = array<i64: 8, 1>}, {pipeline_mode = #tpu.pipeline_mode<synchronous>, transform_indices = @transform_3, window_bounds = array<i64: 8, 72>}, {pipeline_mode = #tpu.pipeline_mode<synchronous>, transform_indices = @transform_4, window_bounds = array<i64: 8, 1>}, {pipeline_mode = #tpu.pipeline_mode<synchronous>, transform_indices = @transform_5, window_bounds = array<i64: 8, 256>}]} {
    %c0 = arith.constant 0 : index
    %c0_0 = arith.constant 0 : index
    %0 = vector.load %arg1[%c0, %c0_0] : memref<8x256xf32, #tpu.memory_space<vmem>>, vector<8x256xf32>
    %1 = tpu.iota {dimensions = array<i32: 1>} : vector<8x256xi32>
    %c4_i32 = arith.constant 4 : i32
    %2 = vector.broadcast %c4_i32 : i32 to vector<8x256xi32>
    %3 = arith.shrsi %1, %2 : vector<8x256xi32>
    %c15_i32 = arith.constant 15 : i32
    %4 = vector.broadcast %c15_i32 : i32 to vector<8x256xi32>
    %5 = arith.andi %1, %4 : vector<8x256xi32>
    %c1_i32 = arith.constant 1 : i32
    %6 = vector.broadcast %c1_i32 : i32 to vector<8x256xi32>
    %7 = arith.cmpi sge, %3, %6 : vector<8x256xi32>
    %c1_i32_1 = arith.constant 1 : i32
    %8 = vector.broadcast %c1_i32_1 : i32 to vector<8x256xi32>
    %9 = arith.cmpi sge, %5, %8 : vector<8x256xi32>
    %10 = arith.andi %7, %9 : vector<8x256xi1>
    %c1_i32_2 = arith.constant 1 : i32
    %11 = vector.broadcast %c1_i32_2 : i32 to vector<8x256xi32>
    %12 = arith.cmpi sge, %3, %11 : vector<8x256xi32>
    %c1_i32_3 = arith.constant 1 : i32
    %13 = vector.broadcast %c1_i32_3 : i32 to vector<8x256xi32>
    %14 = arith.cmpi sge, %3, %13 : vector<8x256xi32>
    %c15_i32_4 = arith.constant 15 : i32
    %15 = vector.broadcast %c15_i32_4 : i32 to vector<8x256xi32>
    %16 = arith.cmpi slt, %5, %15 : vector<8x256xi32>
    %17 = arith.andi %14, %16 : vector<8x256xi1>
    %c1_i32_5 = arith.constant 1 : i32
    %18 = vector.broadcast %c1_i32_5 : i32 to vector<8x256xi32>
    %19 = arith.cmpi sge, %5, %18 : vector<8x256xi32>
    %c15_i32_6 = arith.constant 15 : i32
    %20 = vector.broadcast %c15_i32_6 : i32 to vector<8x256xi32>
    %21 = arith.cmpi slt, %5, %20 : vector<8x256xi32>
    %c15_i32_7 = arith.constant 15 : i32
    %22 = vector.broadcast %c15_i32_7 : i32 to vector<8x256xi32>
    %23 = arith.cmpi slt, %3, %22 : vector<8x256xi32>
    %c1_i32_8 = arith.constant 1 : i32
    %24 = vector.broadcast %c1_i32_8 : i32 to vector<8x256xi32>
    %25 = arith.cmpi sge, %5, %24 : vector<8x256xi32>
    %26 = arith.andi %23, %25 : vector<8x256xi1>
    %c15_i32_9 = arith.constant 15 : i32
    %27 = vector.broadcast %c15_i32_9 : i32 to vector<8x256xi32>
    %28 = arith.cmpi slt, %3, %27 : vector<8x256xi32>
    %c15_i32_10 = arith.constant 15 : i32
    %29 = vector.broadcast %c15_i32_10 : i32 to vector<8x256xi32>
    %30 = arith.cmpi slt, %3, %29 : vector<8x256xi32>
    %c15_i32_11 = arith.constant 15 : i32
    %31 = vector.broadcast %c15_i32_11 : i32 to vector<8x256xi32>
    %32 = arith.cmpi slt, %5, %31 : vector<8x256xi32>
    %33 = arith.andi %30, %32 : vector<8x256xi1>
    %c17_i32 = arith.constant 17 : i32
    %34 = tpu.dynamic_rotate %0 by %c17_i32 dim 1 : vector<8x256xf32>, i32 -> vector<8x256xf32>
    %cst = arith.constant 0.000000e+00 : f32
    %35 = vector.broadcast %cst : f32 to vector<8x256xf32>
    %36 = arith.select %10, %34, %35 : vector<8x256xi1>, vector<8x256xf32>
    %c0_12 = arith.constant 0 : index
    %c0_13 = arith.constant 0 : index
    %37 = vector.load %arg7[%c0_12, %c0_13] : memref<72x256xf32, #tpu.memory_space<vmem>>, vector<8x256xf32>
    tpu.vector_store %arg7[%c0_12, %c0_13], %36 {strides = array<i32>} : memref<72x256xf32, #tpu.memory_space<vmem>>, vector<8x256xf32>,
    %c16_i32 = arith.constant 16 : i32
    %38 = tpu.dynamic_rotate %0 by %c16_i32 dim 1 : vector<8x256xf32>, i32 -> vector<8x256xf32>
    %cst_14 = arith.constant 0.000000e+00 : f32
    %39 = vector.broadcast %cst_14 : f32 to vector<8x256xf32>
    %40 = arith.select %12, %38, %39 : vector<8x256xi1>, vector<8x256xf32>
    %c8 = arith.constant 8 : index
    %c0_15 = arith.constant 0 : index
    %41 = vector.load %arg7[%c8, %c0_15] : memref<72x256xf32, #tpu.memory_space<vmem>>, vector<8x256xf32>
    tpu.vector_store %arg7[%c8, %c0_15], %40 {strides = array<i32>} : memref<72x256xf32, #tpu.memory_space<vmem>>, vector<8x256xf32>,
    %c15_i32_16 = arith.constant 15 : i32
    %42 = tpu.dynamic_rotate %0 by %c15_i32_16 dim 1 : vector<8x256xf32>, i32 -> vector<8x256xf32>
    %cst_17 = arith.constant 0.000000e+00 : f32
    %43 = vector.broadcast %cst_17 : f32 to vector<8x256xf32>
    %44 = arith.select %17, %42, %43 : vector<8x256xi1>, vector<8x256xf32>
    %c16 = arith.constant 16 : index
    %c0_18 = arith.constant 0 : index
    %45 = vector.load %arg7[%c16, %c0_18] : memref<72x256xf32, #tpu.memory_space<vmem>>, vector<8x256xf32>
    tpu.vector_store %arg7[%c16, %c0_18], %44 {strides = array<i32>} : memref<72x256xf32, #tpu.memory_space<vmem>>, vector<8x256xf32>,
    %c1_i32_19 = arith.constant 1 : i32
    %46 = tpu.dynamic_rotate %0 by %c1_i32_19 dim 1 : vector<8x256xf32>, i32 -> vector<8x256xf32>
    %cst_20 = arith.constant 0.000000e+00 : f32
    %47 = vector.broadcast %cst_20 : f32 to vector<8x256xf32>
    %48 = arith.select %19, %46, %47 : vector<8x256xi1>, vector<8x256xf32>
    %c24 = arith.constant 24 : index
    %c0_21 = arith.constant 0 : index
    %49 = vector.load %arg7[%c24, %c0_21] : memref<72x256xf32, #tpu.memory_space<vmem>>, vector<8x256xf32>
    tpu.vector_store %arg7[%c24, %c0_21], %48 {strides = array<i32>} : memref<72x256xf32, #tpu.memory_space<vmem>>, vector<8x256xf32>,
    %c32 = arith.constant 32 : index
    %c0_22 = arith.constant 0 : index
    %50 = vector.load %arg7[%c32, %c0_22] : memref<72x256xf32, #tpu.memory_space<vmem>>, vector<8x256xf32>
    tpu.vector_store %arg7[%c32, %c0_22], %0 {strides = array<i32>} : memref<72x256xf32, #tpu.memory_space<vmem>>, vector<8x256xf32>,
    %c255_i32 = arith.constant 255 : i32
    %51 = tpu.dynamic_rotate %0 by %c255_i32 dim 1 : vector<8x256xf32>, i32 -> vector<8x256xf32>
    %cst_23 = arith.constant 0.000000e+00 : f32
    %52 = vector.broadcast %cst_23 : f32 to vector<8x256xf32>
    %53 = arith.select %21, %51, %52 : vector<8x256xi1>, vector<8x256xf32>
    %c40 = arith.constant 40 : index
    %c0_24 = arith.constant 0 : index
    %54 = vector.load %arg7[%c40, %c0_24] : memref<72x256xf32, #tpu.memory_space<vmem>>, vector<8x256xf32>
    tpu.vector_store %arg7[%c40, %c0_24], %53 {strides = array<i32>} : memref<72x256xf32, #tpu.memory_space<vmem>>, vector<8x256xf32>,
    %c241_i32 = arith.constant 241 : i32
    %55 = tpu.dynamic_rotate %0 by %c241_i32 dim 1 : vector<8x256xf32>, i32 -> vector<8x256xf32>
    %cst_25 = arith.constant 0.000000e+00 : f32
    %56 = vector.broadcast %cst_25 : f32 to vector<8x256xf32>
    %57 = arith.select %26, %55, %56 : vector<8x256xi1>, vector<8x256xf32>
    %c48 = arith.constant 48 : index
    %c0_26 = arith.constant 0 : index
    %58 = vector.load %arg7[%c48, %c0_26] : memref<72x256xf32, #tpu.memory_space<vmem>>, vector<8x256xf32>
    tpu.vector_store %arg7[%c48, %c0_26], %57 {strides = array<i32>} : memref<72x256xf32, #tpu.memory_space<vmem>>, vector<8x256xf32>,
    %c240_i32 = arith.constant 240 : i32
    %59 = tpu.dynamic_rotate %0 by %c240_i32 dim 1 : vector<8x256xf32>, i32 -> vector<8x256xf32>
    %cst_27 = arith.constant 0.000000e+00 : f32
    %60 = vector.broadcast %cst_27 : f32 to vector<8x256xf32>
    %61 = arith.select %28, %59, %60 : vector<8x256xi1>, vector<8x256xf32>
    %c56 = arith.constant 56 : index
    %c0_28 = arith.constant 0 : index
    %62 = vector.load %arg7[%c56, %c0_28] : memref<72x256xf32, #tpu.memory_space<vmem>>, vector<8x256xf32>
    tpu.vector_store %arg7[%c56, %c0_28], %61 {strides = array<i32>} : memref<72x256xf32, #tpu.memory_space<vmem>>, vector<8x256xf32>,
    %c239_i32 = arith.constant 239 : i32
    %63 = tpu.dynamic_rotate %0 by %c239_i32 dim 1 : vector<8x256xf32>, i32 -> vector<8x256xf32>
    %cst_29 = arith.constant 0.000000e+00 : f32
    %64 = vector.broadcast %cst_29 : f32 to vector<8x256xf32>
    %65 = arith.select %33, %63, %64 : vector<8x256xi1>, vector<8x256xf32>
    %c64 = arith.constant 64 : index
    %c0_30 = arith.constant 0 : index
    %66 = vector.load %arg7[%c64, %c0_30] : memref<72x256xf32, #tpu.memory_space<vmem>>, vector<8x256xf32>
    tpu.vector_store %arg7[%c64, %c0_30], %65 {strides = array<i32>} : memref<72x256xf32, #tpu.memory_space<vmem>>, vector<8x256xf32>,
    %c0_31 = arith.constant 0 : index
    %c0_32 = arith.constant 0 : index
    %67 = vector.load %arg7[%c0_31, %c0_32] : memref<72x256xf32, #tpu.memory_space<vmem>>, vector<72x256xf32>
    %c0_33 = arith.constant 0 : index
    %c0_34 = arith.constant 0 : index
    %68 = vector.load %arg2[%c0_33, %c0_34] : memref<8x72xf32, #tpu.memory_space<vmem>>, vector<8x72xf32>
    %cst_35 = arith.constant dense<0.000000e+00> : vector<8x256xf32>
    %69 = tpu.matmul %68, %67, %cst_35 {dimension_numbers = #tpu.dot_dimension_numbers<[1], [0], [0], [1], [0, 0, 1, 1], [], []>} : vector<8x72xf32>, vector<72x256xf32>, vector<8x256xf32> -> vector<8x256xf32>
    %c0_36 = arith.constant 0 : index
    %c0_37 = arith.constant 0 : index
    %70 = vector.load %arg3[%c0_36, %c0_37] : memref<8x1xf32, #tpu.memory_space<vmem>>, vector<8x1xf32>
    %71 = vector.broadcast %70 : vector<8x1xf32> to vector<8x256xf32>
    %72 = arith.addf %69, %71 : vector<8x256xf32>
    %cst_38 = arith.constant 0.000000e+00 : f32
    %73 = vector.broadcast %cst_38 : f32 to vector<8x256xf32>
    %74 = arith.maximumf %72, %73 : vector<8x256xf32>
    %c17_i32_39 = arith.constant 17 : i32
    %75 = tpu.dynamic_rotate %74 by %c17_i32_39 dim 1 : vector<8x256xf32>, i32 -> vector<8x256xf32>
    %cst_40 = arith.constant 0.000000e+00 : f32
    %76 = vector.broadcast %cst_40 : f32 to vector<8x256xf32>
    %77 = arith.select %10, %75, %76 : vector<8x256xi1>, vector<8x256xf32>
    %c0_41 = arith.constant 0 : index
    %c0_42 = arith.constant 0 : index
    %78 = vector.load %arg7[%c0_41, %c0_42] : memref<72x256xf32, #tpu.memory_space<vmem>>, vector<8x256xf32>
    tpu.vector_store %arg7[%c0_41, %c0_42], %77 {strides = array<i32>} : memref<72x256xf32, #tpu.memory_space<vmem>>, vector<8x256xf32>,
    %c16_i32_43 = arith.constant 16 : i32
    %79 = tpu.dynamic_rotate %74 by %c16_i32_43 dim 1 : vector<8x256xf32>, i32 -> vector<8x256xf32>
    %cst_44 = arith.constant 0.000000e+00 : f32
    %80 = vector.broadcast %cst_44 : f32 to vector<8x256xf32>
    %81 = arith.select %12, %79, %80 : vector<8x256xi1>, vector<8x256xf32>
    %c8_45 = arith.constant 8 : index
    %c0_46 = arith.constant 0 : index
    %82 = vector.load %arg7[%c8_45, %c0_46] : memref<72x256xf32, #tpu.memory_space<vmem>>, vector<8x256xf32>
    tpu.vector_store %arg7[%c8_45, %c0_46], %81 {strides = array<i32>} : memref<72x256xf32, #tpu.memory_space<vmem>>, vector<8x256xf32>,
    %c15_i32_47 = arith.constant 15 : i32
    %83 = tpu.dynamic_rotate %74 by %c15_i32_47 dim 1 : vector<8x256xf32>, i32 -> vector<8x256xf32>
    %cst_48 = arith.constant 0.000000e+00 : f32
    %84 = vector.broadcast %cst_48 : f32 to vector<8x256xf32>
    %85 = arith.select %17, %83, %84 : vector<8x256xi1>, vector<8x256xf32>
    %c16_49 = arith.constant 16 : index
    %c0_50 = arith.constant 0 : index
    %86 = vector.load %arg7[%c16_49, %c0_50] : memref<72x256xf32, #tpu.memory_space<vmem>>, vector<8x256xf32>
    tpu.vector_store %arg7[%c16_49, %c0_50], %85 {strides = array<i32>} : memref<72x256xf32, #tpu.memory_space<vmem>>, vector<8x256xf32>,
    %c1_i32_51 = arith.constant 1 : i32
    %87 = tpu.dynamic_rotate %74 by %c1_i32_51 dim 1 : vector<8x256xf32>, i32 -> vector<8x256xf32>
    %cst_52 = arith.constant 0.000000e+00 : f32
    %88 = vector.broadcast %cst_52 : f32 to vector<8x256xf32>
    %89 = arith.select %19, %87, %88 : vector<8x256xi1>, vector<8x256xf32>
    %c24_53 = arith.constant 24 : index
    %c0_54 = arith.constant 0 : index
    %90 = vector.load %arg7[%c24_53, %c0_54] : memref<72x256xf32, #tpu.memory_space<vmem>>, vector<8x256xf32>
    tpu.vector_store %arg7[%c24_53, %c0_54], %89 {strides = array<i32>} : memref<72x256xf32, #tpu.memory_space<vmem>>, vector<8x256xf32>,
    %c32_55 = arith.constant 32 : index
    %c0_56 = arith.constant 0 : index
    %91 = vector.load %arg7[%c32_55, %c0_56] : memref<72x256xf32, #tpu.memory_space<vmem>>, vector<8x256xf32>
    tpu.vector_store %arg7[%c32_55, %c0_56], %74 {strides = array<i32>} : memref<72x256xf32, #tpu.memory_space<vmem>>, vector<8x256xf32>,
    %c255_i32_57 = arith.constant 255 : i32
    %92 = tpu.dynamic_rotate %74 by %c255_i32_57 dim 1 : vector<8x256xf32>, i32 -> vector<8x256xf32>
    %cst_58 = arith.constant 0.000000e+00 : f32
    %93 = vector.broadcast %cst_58 : f32 to vector<8x256xf32>
    %94 = arith.select %21, %92, %93 : vector<8x256xi1>, vector<8x256xf32>
    %c40_59 = arith.constant 40 : index
    %c0_60 = arith.constant 0 : index
    %95 = vector.load %arg7[%c40_59, %c0_60] : memref<72x256xf32, #tpu.memory_space<vmem>>, vector<8x256xf32>
    tpu.vector_store %arg7[%c40_59, %c0_60], %94 {strides = array<i32>} : memref<72x256xf32, #tpu.memory_space<vmem>>, vector<8x256xf32>,
    %c241_i32_61 = arith.constant 241 : i32
    %96 = tpu.dynamic_rotate %74 by %c241_i32_61 dim 1 : vector<8x256xf32>, i32 -> vector<8x256xf32>
    %cst_62 = arith.constant 0.000000e+00 : f32
    %97 = vector.broadcast %cst_62 : f32 to vector<8x256xf32>
    %98 = arith.select %26, %96, %97 : vector<8x256xi1>, vector<8x256xf32>
    %c48_63 = arith.constant 48 : index
    %c0_64 = arith.constant 0 : index
    %99 = vector.load %arg7[%c48_63, %c0_64] : memref<72x256xf32, #tpu.memory_space<vmem>>, vector<8x256xf32>
    tpu.vector_store %arg7[%c48_63, %c0_64], %98 {strides = array<i32>} : memref<72x256xf32, #tpu.memory_space<vmem>>, vector<8x256xf32>,
    %c240_i32_65 = arith.constant 240 : i32
    %100 = tpu.dynamic_rotate %74 by %c240_i32_65 dim 1 : vector<8x256xf32>, i32 -> vector<8x256xf32>
    %cst_66 = arith.constant 0.000000e+00 : f32
    %101 = vector.broadcast %cst_66 : f32 to vector<8x256xf32>
    %102 = arith.select %28, %100, %101 : vector<8x256xi1>, vector<8x256xf32>
    %c56_67 = arith.constant 56 : index
    %c0_68 = arith.constant 0 : index
    %103 = vector.load %arg7[%c56_67, %c0_68] : memref<72x256xf32, #tpu.memory_space<vmem>>, vector<8x256xf32>
    tpu.vector_store %arg7[%c56_67, %c0_68], %102 {strides = array<i32>} : memref<72x256xf32, #tpu.memory_space<vmem>>, vector<8x256xf32>,
    %c239_i32_69 = arith.constant 239 : i32
    %104 = tpu.dynamic_rotate %74 by %c239_i32_69 dim 1 : vector<8x256xf32>, i32 -> vector<8x256xf32>
    %cst_70 = arith.constant 0.000000e+00 : f32
    %105 = vector.broadcast %cst_70 : f32 to vector<8x256xf32>
    %106 = arith.select %33, %104, %105 : vector<8x256xi1>, vector<8x256xf32>
    %c64_71 = arith.constant 64 : index
    %c0_72 = arith.constant 0 : index
    %107 = vector.load %arg7[%c64_71, %c0_72] : memref<72x256xf32, #tpu.memory_space<vmem>>, vector<8x256xf32>
    tpu.vector_store %arg7[%c64_71, %c0_72], %106 {strides = array<i32>} : memref<72x256xf32, #tpu.memory_space<vmem>>, vector<8x256xf32>,
    %c0_73 = arith.constant 0 : index
    %c0_74 = arith.constant 0 : index
    %108 = vector.load %arg7[%c0_73, %c0_74] : memref<72x256xf32, #tpu.memory_space<vmem>>, vector<72x256xf32>
    %c0_75 = arith.constant 0 : index
    %c0_76 = arith.constant 0 : index
    %109 = vector.load %arg4[%c0_75, %c0_76] : memref<8x72xf32, #tpu.memory_space<vmem>>, vector<8x72xf32>
    %cst_77 = arith.constant dense<0.000000e+00> : vector<8x256xf32>
    %110 = tpu.matmul %109, %108, %cst_77 {dimension_numbers = #tpu.dot_dimension_numbers<[1], [0], [0], [1], [0, 0, 1, 1], [], []>} : vector<8x72xf32>, vector<72x256xf32>, vector<8x256xf32> -> vector<8x256xf32>
    %c0_78 = arith.constant 0 : index
    %c0_79 = arith.constant 0 : index
    %111 = vector.load %arg5[%c0_78, %c0_79] : memref<8x1xf32, #tpu.memory_space<vmem>>, vector<8x1xf32>
    %112 = vector.broadcast %111 : vector<8x1xf32> to vector<8x256xf32>
    %113 = arith.addf %110, %112 : vector<8x256xf32>
    %114 = arith.addf %113, %0 : vector<8x256xf32>
    %cst_80 = arith.constant 0.000000e+00 : f32
    %115 = vector.broadcast %cst_80 : f32 to vector<8x256xf32>
    %116 = arith.maximumf %114, %115 : vector<8x256xf32>
    %c0_81 = arith.constant 0 : index
    %c0_82 = arith.constant 0 : index
    %117 = vector.load %arg6[%c0_81, %c0_82] : memref<8x256xf32, #tpu.memory_space<vmem>>, vector<8x256xf32>
    tpu.vector_store %arg6[%c0_81, %c0_82], %116 {strides = array<i32>} : memref<8x256xf32, #tpu.memory_space<vmem>>, vector<8x256xf32>,
    return
  }
  func.func @transform_0(%arg0: i32) -> (i32, i32) {
    %c0_i32 = arith.constant 0 : i32
    %c0_i32_0 = arith.constant 0 : i32
    %c0_i32_1 = arith.constant 0 : i32
    return %c0_i32, %c0_i32_0 : i32, i32
  }
  func.func @transform_1(%arg0: i32) -> (i32, i32) {
    %c0_i32 = arith.constant 0 : i32
    %c0_i32_0 = arith.constant 0 : i32
    %c0_i32_1 = arith.constant 0 : i32
    return %c0_i32, %c0_i32_0 : i32, i32
  }
  func.func @transform_2(%arg0: i32) -> (i32, i32) {
    %c0_i32 = arith.constant 0 : i32
    %c0_i32_0 = arith.constant 0 : i32
    %c0_i32_1 = arith.constant 0 : i32
    return %c0_i32, %c0_i32_0 : i32, i32
  }
  func.func @transform_3(%arg0: i32) -> (i32, i32) {
    %c0_i32 = arith.constant 0 : i32
    %c0_i32_0 = arith.constant 0 : i32
    %c0_i32_1 = arith.constant 0 : i32
    return %c0_i32, %c0_i32_0 : i32, i32
  }
  func.func @transform_4(%arg0: i32) -> (i32, i32) {
    %c0_i32 = arith.constant 0 : i32
    %c0_i32_0 = arith.constant 0 : i32
    %c0_i32_1 = arith.constant 0 : i32
    return %c0_i32, %c0_i32_0 : i32, i32
  }
  func.func @transform_5(%arg0: i32) -> (i32, i32) {
    %c0_i32 = arith.constant 0 : i32
    %c0_i32_0 = arith.constant 0 : i32
    %c0_i32_1 = arith.constant 0 : i32
    return %c0_i32, %c0_i32_0 : i32, i32
  }
}

</mosaic_0001>

<llo_original>
// kernel: tpu_custom_call.1
$region0: #{tpu_custom_call.1}
  #allocation0 [shape = 'u32[]', space=smem, size = 0x4, offset = 0x4, fixed_abs, tag = 'smem constant byte address 0x4 - core index']
  #allocation1 [shape = 'u32[144,128]{1,0:T(1,128)}', space=vmem, size = 0x12000, scoped, tag = 'internal scratch']
  #allocation2 [shape = 'f32[72,256]{1,0:T(8,128)}', space=vmem, size = 0x12000, scoped, tag = 'scratch operand']
  %s0 = inlined_call_operand.vmem [shape: f32[8,256], index: 0, kind: input, shape index: {}]
  %s1 = inlined_call_operand.hbm [shape: f32[8,72], index: 1, kind: input, shape index: {}]
  %s2 = inlined_call_operand.vmem [shape: f32[8,1], index: 2, kind: input, shape index: {}]
  %s3 = inlined_call_operand.vmem [shape: f32[8,72], index: 3, kind: input, shape index: {}]
  %s4 = inlined_call_operand.vmem [shape: f32[8,1], index: 4, kind: input, shape index: {}]
  %s5 = inlined_call_operand.hbm [shape: f32[8,256], index: 5, kind: output, shape index: {}]
  %s6 = sld [smem:[#allocation0]]
  $region34: #{tpu_custom_call.1} parent=0
    _
  %s8 = ssub.s32 1, %s6
  %s9 = scalar_select 0, %s8, %s6
  $region1: #{tpu_custom_call.1} parent=0
    #allocation3 [shape = 'u8[4096]{0}', space=vmem, size = 0x1000, scoped, tag = 'input window, operand 1, single buffered']
    #allocation4 [shape = 's32[1]{0}', space=sflag, size = 0x4, scoped, tag = 'scoped memory for tpu_custom_call.1']
    #allocation5 [shape = 's32[1]{0}', space=sflag, size = 0x4, scoped, tag = 'scoped memory for tpu_custom_call.1']
    #allocation6 [shape = 'u8[8192]{0}', space=vmem, size = 0x2000, scoped, tag = 'output window, operand 0, single buffered']
    %10 = vsyncpa [#allocation4], 0
    %11 = vsyncpa [#allocation5], 0
    // Predicated region
    $region2: #{tpu_custom_call.1} parent=1 // pred_check
      _
    $region3: #{tpu_custom_call.1} parent=1 // pred_check_branch
      %13 = sbr.rel (0) target = $region5
    $region4: #{tpu_custom_call.1} parent=1 // pred_region
      _
    $region5: #{tpu_custom_call.1} parent=1 // pred_fallthru
      _
    // Predicated region
    $region6: #{tpu_custom_call.1} parent=1 // pred_check
      _
    $region7: #{tpu_custom_call.1} parent=1 // pred_check_branch
      %15 = sbr.rel (0) target = $region9
    $region8: #{tpu_custom_call.1} parent=1 // pred_region
      %s17 = ssub.s32 128, 128
      %18 = vsyncadd [#allocation4], %s17
      %s20 = sshll.u32 [#allocation3], 4
      %s21 = int_to_ptr.vmem [resolvable:$true] %s20
      %23 = dma.hbm_to_vmem [thread:$0]  %s1, 128, %s21, [#allocation4]
    $region9: #{tpu_custom_call.1} parent=1 // pred_fallthru
      _
    // Predicated region
    $region10: #{tpu_custom_call.1} parent=1 // pred_check
      _
    $region11: #{tpu_custom_call.1} parent=1 // pred_check_branch
      %25 = sbr.rel (0) target = $region13
    $region12: #{tpu_custom_call.1} parent=1 // pred_region
      _
    $region13: #{tpu_custom_call.1} parent=1 // pred_fallthru
      _
    // Predicated region
    $region14: #{tpu_custom_call.1} parent=1 // pred_check
      _
    $region15: #{tpu_custom_call.1} parent=1 // pred_check_branch
      %27 = sbr.rel (0) target = $region17
    $region16: #{tpu_custom_call.1} parent=1 // pred_region
      _
    $region17: #{tpu_custom_call.1} parent=1 // pred_fallthru
      _
    // Predicated region
    $region18: #{tpu_custom_call.1} parent=1 // pred_check
      _
    $region19: #{tpu_custom_call.1} parent=1 // pred_check_branch
      %29 = sbr.rel (0) target = $region21
    $region20: #{tpu_custom_call.1} parent=1 // pred_region
      _
    $region21: #{tpu_custom_call.1} parent=1 // pred_fallthru
      _
    // Predicated region
    $region22: #{tpu_custom_call.1} parent=1 // pred_check
      _
    $region23: #{tpu_custom_call.1} parent=1 // pred_check_branch
      %31 = sbr.rel (0) target = $region25
    $region24: #{tpu_custom_call.1} parent=1 // pred_region
      %32 = dma.done [#allocation4], 128
    $region25: #{tpu_custom_call.1} parent=1 // pred_fallthru
      _
    %v33 = vld [vmem:[%s0] sm:$0xff]
    %v34 = vld [vmem:[%s0 + $0x8] sm:$0xff]
    %v35 = vlaneseq
    %v36 = vand.u32 %v35, 127
    %v37 = vadd.s32 %v36, 128
    %v38 = vshra.s32 %v36, 4
    %v39 = vshra.s32 %v37, 4
    %v40 = vand.u32 %v36, 15
    %v41 = vand.u32 %v37, 15
    %vm42 = vcmp.ge.s32.totalorder %v38, 1
    %vm43 = vcmp.ge.s32.totalorder %v39, 1
    %vm44 = vcmp.ge.s32.totalorder %v40, 1
    %vm45 = vcmp.ge.s32.totalorder %v41, 1
    %vm46 = vmand %vm42, %vm44
    %vm47 = vmand %vm43, %vm45
    %vm48 = vcmp.lt.s32.totalorder %v40, 15
    %vm49 = vcmp.lt.s32.totalorder %v41, 15
    %vm50 = vmand %vm42, %vm48
    %vm51 = vmand %vm43, %vm49
    %vm52 = vcmp.lt.s32.totalorder %v38, 15
    %vm53 = vcmp.lt.s32.totalorder %v39, 15
    %vm54 = vmand %vm52, %vm44
    %vm55 = vmand %vm53, %vm45
    %vm56 = vmand %vm52, %vm48
    %vm57 = vmand %vm53, %vm49
    %58 = vrot.lane.b32.xlu0 %v33, 17
    %v59 = vpop.permute.xlu0 %58
    %60 = vrot.lane.b32.xlu0 %v34, 17
    %v61 = vpop.permute.xlu0 %60
    %vm62 = vcmp.lt.s32.totalorder %v36, 17
    %v63 = vsel %vm62, %v59, %v61
    %v64 = vsel %vm62, %v61, %v59
    %v65 = vsel %vm46, %v64, 0.0
    %v66 = vsel %vm47, %v63, 0.0
    %67 = vst [vmem:[#allocation2] sm:$0xff] %v65
    %68 = vst [vmem:[#allocation2 + $0x8] sm:$0xff] %v66
    %69 = vrot.lane.b32.xlu0 %v33, 16
    %v70 = vpop.permute.xlu0 %69
    %71 = vrot.lane.b32.xlu0 %v34, 16
    %v72 = vpop.permute.xlu0 %71
    %vm73 = vcmp.lt.s32.totalorder %v36, 16
    %v74 = vsel %vm73, %v70, %v72
    %v75 = vsel %vm73, %v72, %v70
    %v76 = vsel %vm42, %v75, 0.0
    %v77 = vsel %vm43, %v74, 0.0
    %78 = vst [vmem:[#allocation2 + $0x10] sm:$0xff] %v76
    %79 = vst [vmem:[#allocation2 + $0x18] sm:$0xff] %v77
    %80 = vrot.lane.b32.xlu0 %v33, 15
    %v81 = vpop.permute.xlu0 %80
    %82 = vrot.lane.b32.xlu0 %v34, 15
    %v83 = vpop.permute.xlu0 %82
    %vm84 = vcmp.lt.s32.totalorder %v36, 15
    %v85 = vsel %vm84, %v81, %v83
    %v86 = vsel %vm84, %v83, %v81
    %v87 = vsel %vm50, %v86, 0.0
    %v88 = vsel %vm51, %v85, 0.0
    %89 = vst [vmem:[#allocation2 + $0x20] sm:$0xff] %v87
    %90 = vst [vmem:[#allocation2 + $0x28] sm:$0xff] %v88
    %91 = vrot.lane.b32.xlu0 %v33, 1
    %v92 = vpop.permute.xlu0 %91
    %93 = vrot.lane.b32.xlu0 %v34, 1
    %v94 = vpop.permute.xlu0 %93
    %vm95 = vcmp.lt.s32.totalorder %v36, 1
    %v96 = vsel %vm95, %v92, %v94
    %v97 = vsel %vm95, %v94, %v92
    %v98 = vsel %vm44, %v97, 0.0
    %v99 = vsel %vm45, %v96, 0.0
    %100 = vst [vmem:[#allocation2 + $0x30] sm:$0xff] %v98
    %101 = vst [vmem:[#allocation2 + $0x38] sm:$0xff] %v99
    %102 = vst [vmem:[#allocation2 + $0x40] sm:$0xff] %v33
    %103 = vst [vmem:[#allocation2 + $0x48] sm:$0xff] %v34
    %104 = vrot.lane.b32.xlu0 %v33, 127
    %v105 = vpop.permute.xlu0 %104
    %106 = vrot.lane.b32.xlu0 %v34, 127
    %v107 = vpop.permute.xlu0 %106
    %vm108 = vcmp.lt.s32.totalorder %v36, 127
    %v109 = vsel %vm108, %v105, %v107
    %v110 = vsel %vm108, %v107, %v105
    %v111 = vsel %vm48, %v109, 0.0
    %v112 = vsel %vm49, %v110, 0.0
    %113 = vst [vmem:[#allocation2 + $0x50] sm:$0xff] %v111
    %114 = vst [vmem:[#allocation2 + $0x58] sm:$0xff] %v112
    %115 = vrot.lane.b32.xlu0 %v33, 113
    %v116 = vpop.permute.xlu0 %115
    %117 = vrot.lane.b32.xlu0 %v34, 113
    %v118 = vpop.permute.xlu0 %117
    %vm119 = vcmp.lt.s32.totalorder %v36, 113
    %v120 = vsel %vm119, %v116, %v118
    %v121 = vsel %vm119, %v118, %v116
    %v122 = vsel %vm54, %v120, 0.0
    %v123 = vsel %vm55, %v121, 0.0
    %124 = vst [vmem:[#allocation2 + $0x60] sm:$0xff] %v122
    %125 = vst [vmem:[#allocation2 + $0x68] sm:$0xff] %v123
    %126 = vrot.lane.b32.xlu0 %v33, 112
    %v127 = vpop.permute.xlu0 %126
    %128 = vrot.lane.b32.xlu0 %v34, 112
    %v129 = vpop.permute.xlu0 %128
    %vm130 = vcmp.lt.s32.totalorder %v36, 112
    %v131 = vsel %vm130, %v127, %v129
    %v132 = vsel %vm130, %v129, %v127
    %v133 = vsel %vm52, %v131, 0.0
    %v134 = vsel %vm53, %v132, 0.0
    %135 = vst [vmem:[#allocation2 + $0x70] sm:$0xff] %v133
    %136 = vst [vmem:[#allocation2 + $0x78] sm:$0xff] %v134
    %137 = vrot.lane.b32.xlu0 %v33, 111
    %v138 = vpop.permute.xlu0 %137
    %139 = vrot.lane.b32.xlu0 %v34, 111
    %v140 = vpop.permute.xlu0 %139
    %vm141 = vcmp.lt.s32.totalorder %v36, 111
    %v142 = vsel %vm141, %v138, %v140
    %v143 = vsel %vm141, %v140, %v138
    %v144 = vsel %vm56, %v142, 0.0
    %v145 = vsel %vm57, %v143, 0.0
    %146 = vst [vmem:[#allocation2 + $0x80] sm:$0xff] %v144
    %147 = vst [vmem:[#allocation2 + $0x88] sm:$0xff] %v145
    %v148 = vld [vmem:[#allocation2] sm:$0xff]
    %v149 = vld [vmem:[#allocation2 + $0x8] sm:$0xff]
    %v150 = vld [vmem:[#allocation2 + $0x10] sm:$0xff]
    %v151 = vld [vmem:[#allocation2 + $0x18] sm:$0xff]
    %v152 = vld [vmem:[#allocation2 + $0x20] sm:$0xff]
    %v153 = vld [vmem:[#allocation2 + $0x28] sm:$0xff]
    %v154 = vld [vmem:[#allocation2 + $0x30] sm:$0xff]
    %v155 = vld [vmem:[#allocation2 + $0x38] sm:$0xff]
    %v156 = vld [vmem:[#allocation2 + $0x40] sm:$0xff]
    %v157 = vld [vmem:[#allocation2 + $0x48] sm:$0xff]
    %v158 = vld [vmem:[#allocation2 + $0x50] sm:$0xff]
    %v159 = vld [vmem:[#allocation2 + $0x58] sm:$0xff]
    %v160 = vld [vmem:[#allocation2 + $0x60] sm:$0xff]
    %v161 = vld [vmem:[#allocation2 + $0x68] sm:$0xff]
    %v162 = vld [vmem:[#allocation2 + $0x70] sm:$0xff]
    %v163 = vld [vmem:[#allocation2 + $0x78] sm:$0xff]
    %v164 = vld [vmem:[#allocation2 + $0x80] sm:$0xff]
    %v165 = vld [vmem:[#allocation2 + $0x88] sm:$0xff]
    %v166 = vld [vmem:[#allocation3] sm:$0xff]
    %v167 = vld [vmem:[%s2] sm:$0xff]
    %169 = vset.pattern.permute.xlu0 0
    %170 = vperm.xlu0 %169, %v167
    %v171 = vpop.permute.xlu0 %170
    %vm173 = vcmask 588800
    %v175 = vsel %vm173, %v166, 0
    %177 = vmatprep.subr.mxu0 %v149
    %178 = vmatpush1.msra.mxu0 %v148
    %179 = vmatprep.subr.mxu0 %v151
    %180 = vmatpush1.msra.mxu0 %v150
    %181 = vmatprep.subr.mxu0 %v153
    %182 = vmatpush1.msra.mxu0 %v152
    %183 = vmatprep.subr.mxu0 %v155
    %184 = vmatpush1.msra.mxu0 %v154
    %185 = vmatprep.subr.mxu0 %v157
    %186 = vmatpush1.msra.mxu0 %v156
    %187 = vmatprep.subr.mxu0 %v159
    %188 = vmatpush1.msra.mxu0 %v158
    %189 = vmatprep.subr.mxu0 %v161
    %190 = vmatpush1.msra.mxu0 %v160
    %191 = vmatprep.subr.mxu0 %v163
    %192 = vmatpush1.msra.mxu0 %v162
    %193 = vmatprep.subr.mxu0 %v165
    %194 = vmatpush1.msra.mxu0 %v164
    %195 = vmatprep.subr.mxu0 0.0
    %196 = vmatpush1.msra.mxu0 0.0
    %197 = vmatprep.subr.mxu0 0.0
    %198 = vmatpush1.msra.mxu0 0.0
    %199 = vmatprep.subr.mxu0 0.0
    %200 = vmatpush1.msra.mxu0 0.0
    %201 = vmatprep.subr.mxu0 0.0
    %202 = vmatpush1.msra.mxu0 0.0
    %203 = vmatprep.subr.mxu0 0.0
    %204 = vmatpush1.msra.mxu0 0.0
    %205 = vmatprep.subr.mxu0 0.0
    %206 = vmatpush1.msra.mxu0 0.0
    %207 = vmatprep.subr.mxu0 0.0
    %208 = vmatpush1.msra.mxu0 0.0
    %209 = vmatprep.subr.mxu0 0.0
    %210 = vmatpush1.msra.mxu0 0.0
    %211 = vmatprep.subr.mxu0 0.0
    %212 = vmatpush1.msra.mxu0 0.0
    %213 = vmatprep.subr.mxu0 0.0
    %214 = vmatpush1.msra.mxu0 0.0
    %215 = vmatprep.subr.mxu0 0.0
    %216 = vmatpush1.msra.mxu0 0.0
    %217 = vmatprep.subr.mxu0 0.0
    %218 = vmatpush1.msra.mxu0 0.0
    %219 = vmatprep.subr.mxu0 0.0
    %220 = vmatpush1.msra.mxu0 0.0
    %221 = vmatprep.subr.mxu0 0.0
    %222 = vmatpush1.msra.mxu0 0.0
    %223 = vmatprep.subr.mxu0 0.0
    %224 = vmatpush1.msra.mxu0 0.0
    %225 = vmatprep.subr.mxu0 0.0
    %226 = vmatpush1.msra.mxu0 0.0
    %227 = vmatprep.subr.mxu0 0.0
    %228 = vmatpush1.msra.mxu0 0.0
    %229 = vmatprep.subr.mxu0 0.0
    %230 = vmatpush1.msra.mxu0 0.0
    %231 = vmatprep.subr.mxu0 0.0
    %232 = vmatpush1.msra.mxu0 0.0
    %233 = vmatprep.subr.mxu0 0.0
    %234 = vmatpush1.msra.mxu0 0.0
    %235 = vmatprep.subr.mxu0 0.0
    %236 = vmatpush1.msra.mxu0 0.0
    %237 = vmatprep.subr.mxu0 0.0
    %238 = vmatpush1.msra.mxu0 0.0
    %239 = vmatprep.subr.mxu0 0.0
    %240 = vmatpush1.msra.mxu0 0.0
    %241 = vmatprep.mubr.f32.mxu0 0.0
    %242 = vmatmul.mubr.f32.gmra.mrb[0].mxu0 %v175
    %v243 = vpop.f32.mrb[0].mxu0
    %v244 = vadd.f32 %v171, %v243
    %v245 = vpop.f32.mrb[0].mxu0
    %v246 = vadd.f32 %v171, %v245
    %247 = vdwg.mxu0
    %v248 = vmax.f32 %v244, 0.0
    %v249 = vmax.f32 %v246, 0.0
    %250 = vrot.lane.b32.xlu0 %v248, 17
    %v251 = vpop.permute.xlu0 %250
    %252 = vrot.lane.b32.xlu0 %v249, 17
    %v253 = vpop.permute.xlu0 %252
    %v254 = vsel %vm62, %v251, %v253
    %v255 = vsel %vm62, %v253, %v251
    %v256 = vsel %vm46, %v255, 0.0
    %v257 = vsel %vm47, %v254, 0.0
    %258 = vst [vmem:[#allocation2] sm:$0xff] %v256
    %259 = vst [vmem:[#allocation2 + $0x8] sm:$0xff] %v257
    %260 = vrot.lane.b32.xlu0 %v248, 16
    %v261 = vpop.permute.xlu0 %260
    %262 = vrot.lane.b32.xlu0 %v249, 16
    %v263 = vpop.permute.xlu0 %262
    %v264 = vsel %vm73, %v261, %v263
    %v265 = vsel %vm73, %v263, %v261
    %v266 = vsel %vm42, %v265, 0.0
    %v267 = vsel %vm43, %v264, 0.0
    %268 = vst [vmem:[#allocation2 + $0x10] sm:$0xff] %v266
    %269 = vst [vmem:[#allocation2 + $0x18] sm:$0xff] %v267
    %270 = vrot.lane.b32.xlu0 %v248, 15
    %v271 = vpop.permute.xlu0 %270
    %272 = vrot.lane.b32.xlu0 %v249, 15
    %v273 = vpop.permute.xlu0 %272
    %v274 = vsel %vm84, %v271, %v273
    %v275 = vsel %vm84, %v273, %v271
    %v276 = vsel %vm50, %v275, 0.0
    %v277 = vsel %vm51, %v274, 0.0
    %278 = vst [vmem:[#allocation2 + $0x20] sm:$0xff] %v276
    %279 = vst [vmem:[#allocation2 + $0x28] sm:$0xff] %v277
    %280 = vrot.lane.b32.xlu0 %v248, 1
    %v281 = vpop.permute.xlu0 %280
    %282 = vrot.lane.b32.xlu0 %v249, 1
    %v283 = vpop.permute.xlu0 %282
    %v284 = vsel %vm95, %v281, %v283
    %v285 = vsel %vm95, %v283, %v281
    %v286 = vsel %vm44, %v285, 0.0
    %v287 = vsel %vm45, %v284, 0.0
    %288 = vst [vmem:[#allocation2 + $0x30] sm:$0xff] %v286
    %289 = vst [vmem:[#allocation2 + $0x38] sm:$0xff] %v287
    %290 = vst [vmem:[#allocation2 + $0x40] sm:$0xff] %v248
    %291 = vst [vmem:[#allocation2 + $0x48] sm:$0xff] %v249
    %292 = vrot.lane.b32.xlu0 %v248, 127
    %v293 = vpop.permute.xlu0 %292
    %294 = vrot.lane.b32.xlu0 %v249, 127
    %v295 = vpop.permute.xlu0 %294
    %v296 = vsel %vm108, %v293, %v295
    %v297 = vsel %vm108, %v295, %v293
    %v298 = vsel %vm48, %v296, 0.0
    %v299 = vsel %vm49, %v297, 0.0
    %300 = vst [vmem:[#allocation2 + $0x50] sm:$0xff] %v298
    %301 = vst [vmem:[#allocation2 + $0x58] sm:$0xff] %v299
    %302 = vrot.lane.b32.xlu0 %v248, 113
    %v303 = vpop.permute.xlu0 %302
    %304 = vrot.lane.b32.xlu0 %v249, 113
    %v305 = vpop.permute.xlu0 %304
    %v306 = vsel %vm119, %v303, %v305
    %v307 = vsel %vm119, %v305, %v303
    %v308 = vsel %vm54, %v306, 0.0
    %v309 = vsel %vm55, %v307, 0.0
    %310 = vst [vmem:[#allocation2 + $0x60] sm:$0xff] %v308
    %311 = vst [vmem:[#allocation2 + $0x68] sm:$0xff] %v309
    %312 = vrot.lane.b32.xlu0 %v248, 112
    %v313 = vpop.permute.xlu0 %312
    %314 = vrot.lane.b32.xlu0 %v249, 112
    %v315 = vpop.permute.xlu0 %314
    %v316 = vsel %vm130, %v313, %v315
    %v317 = vsel %vm130, %v315, %v313
    %v318 = vsel %vm52, %v316, 0.0
    %v319 = vsel %vm53, %v317, 0.0
    %320 = vst [vmem:[#allocation2 + $0x70] sm:$0xff] %v318
    %321 = vst [vmem:[#allocation2 + $0x78] sm:$0xff] %v319
    %322 = vrot.lane.b32.xlu0 %v248, 111
    %v323 = vpop.permute.xlu0 %322
    %324 = vrot.lane.b32.xlu0 %v249, 111
    %v325 = vpop.permute.xlu0 %324
    %v326 = vsel %vm141, %v323, %v325
    %v327 = vsel %vm141, %v325, %v323
    %v328 = vsel %vm56, %v326, 0.0
    %v329 = vsel %vm57, %v327, 0.0
    %330 = vst [vmem:[#allocation2 + $0x80] sm:$0xff] %v328
    %331 = vst [vmem:[#allocation2 + $0x88] sm:$0xff] %v329
    %v332 = vld [vmem:[#allocation2] sm:$0xff]
    %v333 = vld [vmem:[#allocation2 + $0x8] sm:$0xff]
    %v334 = vld [vmem:[#allocation2 + $0x10] sm:$0xff]
    %v335 = vld [vmem:[#allocation2 + $0x18] sm:$0xff]
    %v336 = vld [vmem:[#allocation2 + $0x20] sm:$0xff]
    %v337 = vld [vmem:[#allocation2 + $0x28] sm:$0xff]
    %v338 = vld [vmem:[#allocation2 + $0x30] sm:$0xff]
    %v339 = vld [vmem:[#allocation2 + $0x38] sm:$0xff]
    %v340 = vld [vmem:[#allocation2 + $0x40] sm:$0xff]
    %v341 = vld [vmem:[#allocation2 + $0x48] sm:$0xff]
    %v342 = vld [vmem:[#allocation2 + $0x50] sm:$0xff]
    %v343 = vld [vmem:[#allocation2 + $0x58] sm:$0xff]
    %v344 = vld [vmem:[#allocation2 + $0x60] sm:$0xff]
    %v345 = vld [vmem:[#allocation2 + $0x68] sm:$0xff]
    %v346 = vld [vmem:[#allocation2 + $0x70] sm:$0xff]
    %v347 = vld [vmem:[#allocation2 + $0x78] sm:$0xff]
    %v348 = vld [vmem:[#allocation2 + $0x80] sm:$0xff]
    %v349 = vld [vmem:[#allocation2 + $0x88] sm:$0xff]
    %v350 = vld [vmem:[%s3] sm:$0xff]
    %v351 = vld [vmem:[%s4] sm:$0xff]
    %353 = vset.pattern.permute.xlu0 0
    %354 = vperm.xlu0 %353, %v351
    %v355 = vpop.permute.xlu0 %354
    %v358 = vsel %vm173, %v350, 0
    %360 = vmatprep.subr.mxu0 %v333
    %361 = vmatpush1.msra.mxu0 %v332
    %362 = vmatprep.subr.mxu0 %v335
    %363 = vmatpush1.msra.mxu0 %v334
    %364 = vmatprep.subr.mxu0 %v337
    %365 = vmatpush1.msra.mxu0 %v336
    %366 = vmatprep.subr.mxu0 %v339
    %367 = vmatpush1.msra.mxu0 %v338
    %368 = vmatprep.subr.mxu0 %v341
    %369 = vmatpush1.msra.mxu0 %v340
    %370 = vmatprep.subr.mxu0 %v343
    %371 = vmatpush1.msra.mxu0 %v342
    %372 = vmatprep.subr.mxu0 %v345
    %373 = vmatpush1.msra.mxu0 %v344
    %374 = vmatprep.subr.mxu0 %v347
    %375 = vmatpush1.msra.mxu0 %v346
    %376 = vmatprep.subr.mxu0 %v349
    %377 = vmatpush1.msra.mxu0 %v348
    %378 = vmatprep.subr.mxu0 0.0
    %379 = vmatpush1.msra.mxu0 0.0
    %380 = vmatprep.subr.mxu0 0.0
    %381 = vmatpush1.msra.mxu0 0.0
    %382 = vmatprep.subr.mxu0 0.0
    %383 = vmatpush1.msra.mxu0 0.0
    %384 = vmatprep.subr.mxu0 0.0
    %385 = vmatpush1.msra.mxu0 0.0
    %386 = vmatprep.subr.mxu0 0.0
    %387 = vmatpush1.msra.mxu0 0.0
    %388 = vmatprep.subr.mxu0 0.0
    %389 = vmatpush1.msra.mxu0 0.0
    %390 = vmatprep.subr.mxu0 0.0
    %391 = vmatpush1.msra.mxu0 0.0
    %392 = vmatprep.subr.mxu0 0.0
    %393 = vmatpush1.msra.mxu0 0.0
    %394 = vmatprep.subr.mxu0 0.0
    %395 = vmatpush1.msra.mxu0 0.0
    %396 = vmatprep.subr.mxu0 0.0
    %397 = vmatpush1.msra.mxu0 0.0
    %398 = vmatprep.subr.mxu0 0.0
    %399 = vmatpush1.msra.mxu0 0.0
    %400 = vmatprep.subr.mxu0 0.0
    %401 = vmatpush1.msra.mxu0 0.0
    %402 = vmatprep.subr.mxu0 0.0
    %403 = vmatpush1.msra.mxu0 0.0
    %404 = vmatprep.subr.mxu0 0.0
    %405 = vmatpush1.msra.mxu0 0.0
    %406 = vmatprep.subr.mxu0 0.0
    %407 = vmatpush1.msra.mxu0 0.0
    %408 = vmatprep.subr.mxu0 0.0
    %409 = vmatpush1.msra.mxu0 0.0
    %410 = vmatprep.subr.mxu0 0.0
    %411 = vmatpush1.msra.mxu0 0.0
    %412 = vmatprep.subr.mxu0 0.0
    %413 = vmatpush1.msra.mxu0 0.0
    %414 = vmatprep.subr.mxu0 0.0
    %415 = vmatpush1.msra.mxu0 0.0
    %416 = vmatprep.subr.mxu0 0.0
    %417 = vmatpush1.msra.mxu0 0.0
    %418 = vmatprep.subr.mxu0 0.0
    %419 = vmatpush1.msra.mxu0 0.0
    %420 = vmatprep.subr.mxu0 0.0
    %421 = vmatpush1.msra.mxu0 0.0
    %422 = vmatprep.subr.mxu0 0.0
    %423 = vmatpush1.msra.mxu0 0.0
    %424 = vmatprep.mubr.f32.mxu0 0.0
    %425 = vmatmul.mubr.f32.gmra.mrb[0].mxu0 %v358
    %v426 = vpop.f32.mrb[0].mxu0
    %v427 = vadd.f32 %v355, %v426
    %v428 = vpop.f32.mrb[0].mxu0
    %v429 = vadd.f32 %v355, %v428
    %430 = vdwg.mxu0
    %v431 = vadd.f32 %v427, %v33
    %v432 = vadd.f32 %v429, %v34
    %v433 = vmax.f32 %v431, 0.0
    %v434 = vmax.f32 %v432, 0.0
    %435 = vst [vmem:[#allocation6] sm:$0xff] %v433
    %436 = vst [vmem:[#allocation6 + $0x8] sm:$0xff] %v434
    // Predicated region
    $region26: #{tpu_custom_call.1} parent=1 // pred_check
      _
    $region27: #{tpu_custom_call.1} parent=1 // pred_check_branch
      %438 = sbr.rel (0) target = $region29
    $region28: #{tpu_custom_call.1} parent=1 // pred_region
      %s440 = ssub.s32 256, 256
      %441 = vsyncadd [#allocation5], %s440
      %s443 = sshll.u32 [#allocation6], 4
      %s444 = int_to_ptr.vmem [resolvable:$true] %s443
      %446 = dma.vmem_to_hbm [thread:$0]  %s444, 256, %s5, [#allocation5]
    $region29: #{tpu_custom_call.1} parent=1 // pred_fallthru
      _
    // Predicated region
    $region30: #{tpu_custom_call.1} parent=1 // pred_check
      _
    $region31: #{tpu_custom_call.1} parent=1 // pred_check_branch
      %448 = sbr.rel (0) target = $region33
    $region32: #{tpu_custom_call.1} parent=1 // pred_region
      %449 = dma.done [#allocation5], 256
    $region33: #{tpu_custom_call.1} parent=1 // pred_fallthru
      _
    %450 = vsyncpa [#allocation4], 1
    %451 = vsyncpa [#allocation5], 1

</llo_original>
